<compile_context>
chip_gen: v6e
topology: v6e:2x2x1
jax: 0.10.0
libtpu: 0.0.40
codegen_flags: <defaults>
</compile_context>

<pallas_src>
import functools

import jax
import jax.numpy as jnp
from jax import lax
from jax.experimental import pallas as pl
from jax.experimental.pallas import tpu as pltpu


# --------------------------------------------------------------------------- #
# Pass A: stage-1 conv (4x4, stride 2, pad 1) + per-tile BN1 partial stats.
# Input arrives as space-to-depth of the padded image, so the conv is a 2x2
# VALID stencil; patches are built in-kernel from the tile + a 1-row halo.
# --------------------------------------------------------------------------- #
def _stage1_kernel(xm_ref, xb_ref, w1_ref, y1_ref, st_ref, *, tr, wo):
    xm = xm_ref[0].astype(jnp.float32)                 # (tr,   wo+1, 4*cin)
    xb = xb_ref[0].astype(jnp.float32)                 # (1,    wo+1, 4*cin)
    xall = jnp.concatenate([xm, xb], axis=0)           # (tr+1, wo+1, 4*cin)

    taps = []
    for dy in (0, 1):
        for dx in (0, 1):
            taps.append(xall[dy:dy + tr, dx:dx + wo, :])
    patches = jnp.concatenate(taps, axis=-1)           # (tr, wo, 16*cin)
    patches = patches.reshape(tr * wo, -1).astype(jnp.bfloat16)

    y1 = jnp.dot(patches, w1_ref[...],
                 preferred_element_type=jnp.float32)   # (tr*wo, C) f32 accum
    c = y1.shape[-1]
    y1_ref[...] = y1.reshape(1, tr, wo, c)

    s = jnp.sum(y1, axis=0, keepdims=True)             # (1, C)
    sq = jnp.sum(y1 * y1, axis=0, keepdims=True)       # (1, C)
    st_ref[...] = jnp.concatenate([s, sq], axis=0).reshape(1, 1, 2, c)


# --------------------------------------------------------------------------- #
# Pass B: BN1 + LeakyReLU (folded scale/shift), stage-2 conv (3x3, s1, p1) as
# a single K = 9*C matmul on an in-VMEM 9-tap concat, + BN2 partial stats.
# Row halos come from two extra 1-row BlockSpecs of y1; image boundaries are
# zeroed once per tile (no per-tap masks).
# --------------------------------------------------------------------------- #
def _stage2_kernel(yt_ref, ym_ref, yb_ref, a1_ref, b1_ref, w2_ref,
                   y2_ref, st_ref, *, tr, wo, slope):
    i = pl.program_id(1)
    nrt = pl.num_programs(1)

    a1 = a1_ref[...].reshape(1, 1, -1)
    b1 = b1_ref[...].reshape(1, 1, -1)

    def act(y):
        z = y * a1 + b1
        return jnp.where(z >= 0, z, slope * z)

    h_mid = act(ym_ref[0])                                        # (tr, wo, C)
    h_top = act(yt_ref[0]) * (i > 0).astype(jnp.float32)          # zero at top edge
    h_bot = act(yb_ref[0]) * (i < nrt - 1).astype(jnp.float32)    # zero at bottom edge

    h = jnp.concatenate([h_top, h_mid, h_bot], axis=0)            # (tr+2, wo, C)
    c = h.shape[-1]
    zcol = jnp.zeros((tr + 2, 1, c), jnp.float32)
    hp = jnp.concatenate([zcol, h, zcol], axis=1)                 # (tr+2, wo+2, C)

    taps = []
    for dy in range(3):
        for dx in range(3):
            taps.append(hp[dy:dy + tr, dx:dx + wo, :])
    patches = jnp.concatenate(taps, axis=-1)                      # (tr, wo, 9*C)
    patches = patches.reshape(tr * wo, 9 * c).astype(jnp.bfloat16)

    y2 = jnp.dot(patches, w2_ref[...],
                 preferred_element_type=jnp.float32)              # (tr*wo, C)
    y2_ref[...] = y2.reshape(1, tr, wo, c)

    s = jnp.sum(y2, axis=0, keepdims=True)
    sq = jnp.sum(y2 * y2, axis=0, keepdims=True)
    st_ref[...] = jnp.concatenate([s, sq], axis=0).reshape(1, 1, 2, c)


# --------------------------------------------------------------------------- #
# Pass C: BN2 (folded scale/shift) + LeakyReLU, tiled over flat M rows.
# --------------------------------------------------------------------------- #
def _bn_act_kernel(y_ref, a_ref, b_ref, o_ref, *, slope):
    z = y_ref[...] * a_ref[...] + b_ref[...]
    o_ref[...] = jnp.where(z >= 0, z, slope * z)


# ------------------------------- JAX glue ---------------------------------- #

def _pick_tile(total, cap, mult):
    """Largest divisor of `total` that is <= cap and a multiple of `mult`."""
    cap = max(mult, min(cap, total))
    for t in range(cap, 0, -1):
        if total % t == 0 and t % mult == 0:
            return t
    return total


def _fold_bn(partial_stats, m, gamma, beta, eps):
    """Fold per-tile (sum, sumsq) partials into BN scale/shift (train mode)."""
    tot = jnp.sum(partial_stats.astype(jnp.float32), axis=(0, 1))   # (2, C)
    mean = tot[0] / m
    var = jnp.maximum(tot[1] / m - mean * mean, 0.0)
    a = gamma * lax.rsqrt(var + eps)
    b = beta - mean * a
    return a.reshape(1, -1), b.reshape(1, -1)


def encoder_forward(x_nchw, params, *, row_tile=4, m_tile=64):
    """Pallas Encoder forward. Input/output NCHW (PyTorch convention).

    row_tile / m_tile are small to exercise multi-tile grids at demo scale;
    in production size them from the VMEM budget (e.g. 64-256 rows on v6e,
    roughly half that on v7x's 64 MiB VMEM).
    """
    x = jnp.transpose(x_nchw, (0, 2, 3, 1)).astype(jnp.float32)     # NCHW->NHWC
    n, h, w, cin = x.shape
    assert h % 2 == 0 and w % 2 == 0
    ho, wo = h // 2, w // 2
    c = params["w1"].shape[0]
    m = n * ho * wo

    tr = _pick_tile(ho, row_tile, 1)
    nrt = ho // tr
    tm = _pick_tile(m, m_tile, 8)

    # --- space-to-depth of the zero-padded input (pure layout, ~1x bytes) ----
    xp = jnp.pad(x, ((0, 0), (1, 1), (1, 1), (0, 0)))
    xs = xp.reshape(n, ho + 1, 2, wo + 1, 2, cin)
    xs = jnp.transpose(xs, (0, 1, 3, 2, 4, 5)).reshape(n, ho + 1, wo + 1, 4 * cin)
    xs = xs.astype(jnp.bfloat16)

    # --- weights as bf16 matmul operands matching the in-kernel tap order ----
    # Conv-1 bias intentionally dropped (cancelled by train-mode BN mean).
    w1 = params["w1"].astype(jnp.float32).reshape(c, cin, 2, 2, 2, 2)
    w1_mat = jnp.transpose(w1, (2, 4, 3, 5, 1, 0)).reshape(16 * cin, c)
    w1_mat = w1_mat.astype(jnp.bfloat16)
    w2_mat = jnp.transpose(params["w2"].astype(jnp.float32),
                           (2, 3, 1, 0)).reshape(9 * c, c).astype(jnp.bfloat16)

    cparams = pltpu.CompilerParams(
        dimension_semantics=("parallel", "parallel"),
        vmem_limit_bytes=32 * 1024 * 1024)

    # ------------------------------ pass A ----------------------------------
    s1_cost = pl.CostEstimate(
        flops=2 * m * (16 * cin) * c, transcendentals=0,
        bytes_accessed=int(xs.size * 2 + m * c * 4 + 16 * cin * c * 2))
    y1, st1 = pl.pallas_call(
        functools.partial(_stage1_kernel, tr=tr, wo=wo),
        grid=(n, nrt),
        in_specs=[
            pl.BlockSpec((1, tr, wo + 1, 4 * cin), lambda b, i: (b, i, 0, 0)),
            pl.BlockSpec((1, 1, wo + 1, 4 * cin),
                         lambda b, i: (b, i * tr + tr, 0, 0)),   # 1-row bottom halo
            pl.BlockSpec((16 * cin, c), lambda b, i: (0, 0)),
        ],
        out_specs=(
            pl.BlockSpec((1, tr, wo, c), lambda b, i: (b, i, 0, 0)),
            pl.BlockSpec((1, 1, 2, c), lambda b, i: (b, i, 0, 0)),
        ),
        out_shape=(
            jax.ShapeDtypeStruct((n, ho, wo, c), jnp.float32),
            jax.ShapeDtypeStruct((n, nrt, 2, c), jnp.float32),
        ),
        compiler_params=cparams,
        cost_estimate=s1_cost,
    )(xs, xs, w1_mat)

    a1, b1 = _fold_bn(st1, m, params["g1"].astype(jnp.float32),
                      params["beta1"].astype(jnp.float32), 1e-5)

    # ------------------------------ pass B ----------------------------------
    s2_cost = pl.CostEstimate(
        flops=2 * m * (9 * c) * c, transcendentals=0,
        bytes_accessed=int(m * c * 4 * 2 + 9 * c * c * 2))
    y2, st2 = pl.pallas_call(
        functools.partial(_stage2_kernel, tr=tr, wo=wo, slope=0.01),
        grid=(n, nrt),
        in_specs=[
            pl.BlockSpec((1, 1, wo, c),
                         lambda b, i: (b, jnp.maximum(i * tr - 1, 0), 0, 0)),
            pl.BlockSpec((1, tr, wo, c), lambda b, i: (b, i, 0, 0)),
            pl.BlockSpec((1, 1, wo, c),
                         lambda b, i: (b, jnp.minimum(i * tr + tr, ho - 1), 0, 0)),
            pl.BlockSpec((1, c), lambda b, i: (0, 0)),
            pl.BlockSpec((1, c), lambda b, i: (0, 0)),
            pl.BlockSpec((9 * c, c), lambda b, i: (0, 0)),
        ],
        out_specs=(
            pl.BlockSpec((1, tr, wo, c), lambda b, i: (b, i, 0, 0)),
            pl.BlockSpec((1, 1, 2, c), lambda b, i: (b, i, 0, 0)),
        ),
        out_shape=(
            jax.ShapeDtypeStruct((n, ho, wo, c), jnp.float32),
            jax.ShapeDtypeStruct((n, nrt, 2, c), jnp.float32),
        ),
        compiler_params=cparams,
        cost_estimate=s2_cost,
    )(y1, y1, y1, a1, b1, w2_mat)

    a2, b2 = _fold_bn(st2, m, params["g2"].astype(jnp.float32),
                      params["beta2"].astype(jnp.float32), 1e-3)

    # ------------------------------ pass C ----------------------------------
    out = pl.pallas_call(
        functools.partial(_bn_act_kernel, slope=0.01),
        grid=(m // tm,),
        in_specs=[
            pl.BlockSpec((tm, c), lambda i: (i, 0)),
            pl.BlockSpec((1, c), lambda i: (0, 0)),
            pl.BlockSpec((1, c), lambda i: (0, 0)),
        ],
        out_specs=pl.BlockSpec((tm, c), lambda i: (i, 0)),
        out_shape=jax.ShapeDtypeStruct((m, c), jnp.float32),
        compiler_params=pltpu.CompilerParams(
            dimension_semantics=("parallel",),
            vmem_limit_bytes=32 * 1024 * 1024),
    )(y2.reshape(m, c), a2, b2)

    out = out.reshape(n, ho, wo, c)
    return jnp.transpose(out, (0, 3, 1, 2))                        # NHWC -> NCHW


# ----------------------------- pure-JAX reference --------------------------- #

def _ref_forward(x_nchw, params):
    def conv(x, w, stride, pad, bias=None):
        y = lax.conv_general_dilated(
            x, w, (stride, stride), ((pad, pad), (pad, pad)),
            dimension_numbers=("NCHW", "OIHW", "NCHW"))
        if bias is not None:
            y = y + bias.reshape(1, -1, 1, 1)
        return y

    def bn_lrelu(y, gamma, beta, eps):
        mean = jnp.mean(y, axis=(0, 2, 3), keepdims=True)
        var = jnp.mean((y - mean) ** 2, axis=(0, 2, 3), keepdims=True)
        z = gamma.reshape(1, -1, 1, 1) * (y - mean) / jnp.sqrt(var + eps) \
            + beta.reshape(1, -1, 1, 1)
        return jnp.where(z >= 0, z, 0.01 * z)

    y = conv(x_nchw, params["w1"], 2, 1, params["b1"])
    y = bn_lrelu(y, params["g1"], params["beta1"], 1e-5)
    y = conv(y, params["w2"], 1, 1, None)
    y = bn_lrelu(y, params["g2"], params["beta2"], 1e-3)
    return y


# --------------------------------- main ------------------------------------ #

if __name__ == "__main__":
    in_channel, channel = 4, 32
    N, H, W = 2, 16, 16

    key = jax.random.PRNGKey(0)
    ks = jax.random.split(key, 8)

    params = {
        # Conv2d(in_channel, channel, 4, stride=2, padding=1) — has bias
        "w1": 0.1 * jax.random.normal(ks[0], (channel, in_channel, 4, 4), jnp.float32),
        "b1": 0.1 * jax.random.normal(ks[1], (channel,), jnp.float32),
        # norm_layer(channel) == BatchNorm2d(channel)
        "g1": 1.0 + 0.1 * jax.random.normal(ks[2], (channel,), jnp.float32),
        "beta1": 0.1 * jax.random.normal(ks[3], (channel,), jnp.float32),
        # BasicConv2d: Conv2d(channel, channel, 3, padding=1, bias=False)
        "w2": 0.1 * jax.random.normal(ks[4], (channel, channel, 3, 3), jnp.float32),
        # BatchNorm2d(channel, eps=0.001)
        "g2": 1.0 + 0.1 * jax.random.normal(ks[5], (channel,), jnp.float32),
        "beta2": 0.1 * jax.random.normal(ks[6], (channel,), jnp.float32),
    }

    x = jax.random.normal(ks[7], (N, in_channel, H, W), jnp.float32)

    out = jax.block_until_ready(encoder_forward(x, params))
    assert out.shape == (N, channel, H // 2, W // 2), out.shape

    ref = jax.block_until_ready(_ref_forward(x, params))
    err = float(jnp.max(jnp.abs(out - ref)))
    # bf16 MXU operands (f32 accumulation) -> relaxed tolerance vs. f32 ref.
    assert err < 3e-2, err

    print("KERNEL_OK")
</pallas_src>

<mosaic_0001>
module attributes {stable_mosaic.version = 11 : i64} {
  func.func @_stage1_kernel(%arg0: i32, %arg1: i32, %arg2: memref<1x4x9x16xbf16, #tpu.memory_space<vmem>>, %arg3: memref<1x1x9x16xbf16, #tpu.memory_space<vmem>>, %arg4: memref<64x32xbf16, #tpu.memory_space<vmem>>, %arg5: memref<1x4x8x32xf32, #tpu.memory_space<vmem>>, %arg6: memref<1x1x2x32xf32, #tpu.memory_space<vmem>>) attributes {dimension_semantics = [#tpu.dimension_semantics<parallel>, #tpu.dimension_semantics<parallel>], iteration_bounds = array<i64: 2, 2>, scalar_prefetch = 0 : i64, scratch_operands = 0 : i64, tpu.core_type = #tpu.core_type<tc>, window_params = [{transform_indices = @transform_0, window_bounds = array<i64: 1, 4, 9, 16>}, {transform_indices = @transform_1, window_bounds = array<i64: 1, 1, 9, 16>}, {pipeline_mode = #tpu.pipeline_mode<synchronous>, transform_indices = @transform_2, window_bounds = array<i64: 64, 32>}, {transform_indices = @transform_3, window_bounds = array<i64: 1, 4, 8, 32>}, {transform_indices = @transform_4, window_bounds = array<i64: 1, 1, 2, 32>}]} {
    %c0 = arith.constant 0 : index
    %c0_0 = arith.constant 0 : index
    %c0_1 = arith.constant 0 : index
    %c0_2 = arith.constant 0 : index
    %0 = vector.load %arg2[%c0, %c0_0, %c0_1, %c0_2] : memref<1x4x9x16xbf16, #tpu.memory_space<vmem>>, vector<1x4x9x16xbf16>
    %1 = vector.shape_cast %0 : vector<1x4x9x16xbf16> to vector<4x9x16xbf16>
    %2 = arith.extf %1 : vector<4x9x16xbf16> to vector<4x9x16xf32>
    %c0_3 = arith.constant 0 : index
    %c0_4 = arith.constant 0 : index
    %c0_5 = arith.constant 0 : index
    %c0_6 = arith.constant 0 : index
    %3 = vector.load %arg3[%c0_3, %c0_4, %c0_5, %c0_6] : memref<1x1x9x16xbf16, #tpu.memory_space<vmem>>, vector<1x1x9x16xbf16>
    %4 = vector.shape_cast %3 : vector<1x1x9x16xbf16> to vector<1x9x16xbf16>
    %5 = arith.extf %4 : vector<1x9x16xbf16> to vector<1x9x16xf32>
    %6 = tpu.concatenate %2, %5 in 0 : vector<4x9x16xf32>, vector<1x9x16xf32> -> vector<5x9x16xf32>
    %7 = vector.extract_strided_slice %6 {offsets = [0, 0, 0], sizes = [4, 8, 16], strides = [1, 1, 1]} : vector<5x9x16xf32> to vector<4x8x16xf32>
    %8 = vector.extract_strided_slice %6 {offsets = [0, 1, 0], sizes = [4, 8, 16], strides = [1, 1, 1]} : vector<5x9x16xf32> to vector<4x8x16xf32>
    %9 = vector.extract_strided_slice %6 {offsets = [1, 0, 0], sizes = [4, 8, 16], strides = [1, 1, 1]} : vector<5x9x16xf32> to vector<4x8x16xf32>
    %10 = vector.extract_strided_slice %6 {offsets = [1, 1, 0], sizes = [4, 8, 16], strides = [1, 1, 1]} : vector<5x9x16xf32> to vector<4x8x16xf32>
    %11 = tpu.concatenate %7, %8, %9, %10 in 2 : vector<4x8x16xf32>, vector<4x8x16xf32>, vector<4x8x16xf32>, vector<4x8x16xf32> -> vector<4x8x64xf32>
    %12 = vector.shape_cast %11 : vector<4x8x64xf32> to vector<32x64xf32>
    %13 = arith.truncf %12 : vector<32x64xf32> to vector<32x64xbf16>
    %c0_7 = arith.constant 0 : index
    %c0_8 = arith.constant 0 : index
    %14 = vector.load %arg4[%c0_7, %c0_8] : memref<64x32xbf16, #tpu.memory_space<vmem>>, vector<64x32xbf16>
    %cst = arith.constant dense<0.000000e+00> : vector<32x32xf32>
    %15 = tpu.matmul %13, %14, %cst {dimension_numbers = #tpu.dot_dimension_numbers<[1], [0], [0], [1], [0, 0, 1, 1], [], []>} : vector<32x64xbf16>, vector<64x32xbf16>, vector<32x32xf32> -> vector<32x32xf32>
    %16 = vector.shape_cast %15 : vector<32x32xf32> to vector<1x4x8x32xf32>
    %c0_9 = arith.constant 0 : index
    %c0_10 = arith.constant 0 : index
    %c0_11 = arith.constant 0 : index
    %c0_12 = arith.constant 0 : index
    %17 = vector.load %arg5[%c0_9, %c0_10, %c0_11, %c0_12] : memref<1x4x8x32xf32, #tpu.memory_space<vmem>>, vector<1x4x8x32xf32>
    tpu.vector_store %arg5[%c0_9, %c0_10, %c0_11, %c0_12], %16 {strides = array<i32>} : memref<1x4x8x32xf32, #tpu.memory_space<vmem>>, vector<1x4x8x32xf32>,
    %cst_13 = arith.constant dense<0.000000e+00> : vector<32xf32>
    %18 = vector.multi_reduction <add>, %15, %cst_13 [0] : vector<32x32xf32> to vector<32xf32>
    %19 = vector.shape_cast %18 : vector<32xf32> to vector<1x32xf32>
    %20 = arith.mulf %15, %15 : vector<32x32xf32>
    %cst_14 = arith.constant dense<0.000000e+00> : vector<32xf32>
    %21 = vector.multi_reduction <add>, %20, %cst_14 [0] : vector<32x32xf32> to vector<32xf32>
    %22 = vector.shape_cast %21 : vector<32xf32> to vector<1x32xf32>
    %23 = tpu.concatenate %19, %22 in 0 : vector<1x32xf32>, vector<1x32xf32> -> vector<2x32xf32>
    %24 = vector.shape_cast %23 : vector<2x32xf32> to vector<1x1x2x32xf32>
    %c0_15 = arith.constant 0 : index
    %c0_16 = arith.constant 0 : index
    %c0_17 = arith.constant 0 : index
    %c0_18 = arith.constant 0 : index
    %25 = vector.load %arg6[%c0_15, %c0_16, %c0_17, %c0_18] : memref<1x1x2x32xf32, #tpu.memory_space<vmem>>, vector<1x1x2x32xf32>
    tpu.vector_store %arg6[%c0_15, %c0_16, %c0_17, %c0_18], %24 {strides = array<i32>} : memref<1x1x2x32xf32, #tpu.memory_space<vmem>>, vector<1x1x2x32xf32>,
    return
  }
  func.func @transform_0(%arg0: i32, %arg1: i32) -> (i32, i32, i32, i32) {
    %c0_i32 = arith.constant 0 : i32
    %c0_i32_0 = arith.constant 0 : i32
    %c0_i32_1 = arith.constant 0 : i32
    return %arg0, %arg1, %c0_i32, %c0_i32_0 : i32, i32, i32, i32
  }
  func.func @transform_1(%arg0: i32, %arg1: i32) -> (i32, i32, i32, i32) {
    %c4_i32 = arith.constant 4 : i32
    %0 = arith.muli %arg1, %c4_i32 : i32
    %c4_i32_0 = arith.constant 4 : i32
    %1 = arith.addi %0, %c4_i32_0 : i32
    %c0_i32 = arith.constant 0 : i32
    %c0_i32_1 = arith.constant 0 : i32
    %c0_i32_2 = arith.constant 0 : i32
    return %arg0, %1, %c0_i32, %c0_i32_1 : i32, i32, i32, i32
  }
  func.func @transform_2(%arg0: i32, %arg1: i32) -> (i32, i32) {
    %c0_i32 = arith.constant 0 : i32
    %c0_i32_0 = arith.constant 0 : i32
    %c0_i32_1 = arith.constant 0 : i32
    return %c0_i32, %c0_i32_0 : i32, i32
  }
  func.func @transform_3(%arg0: i32, %arg1: i32) -> (i32, i32, i32, i32) {
    %c0_i32 = arith.constant 0 : i32
    %c0_i32_0 = arith.constant 0 : i32
    %c0_i32_1 = arith.constant 0 : i32
    return %arg0, %arg1, %c0_i32, %c0_i32_0 : i32, i32, i32, i32
  }
  func.func @transform_4(%arg0: i32, %arg1: i32) -> (i32, i32, i32, i32) {
    %c0_i32 = arith.constant 0 : i32
    %c0_i32_0 = arith.constant 0 : i32
    %c0_i32_1 = arith.constant 0 : i32
    return %arg0, %arg1, %c0_i32, %c0_i32_0 : i32, i32, i32, i32
  }
}

</mosaic_0001>

<llo_original>
// kernel: tpu_custom_call.1
$region0: #{tpu_custom_call.1}
  #allocation0 [shape = 'u32[]', space=smem, size = 0x4, offset = 0x4, fixed_abs, tag = 'smem constant byte address 0x4 - core index']
  #allocation1 [shape = 'u32[144,128]{1,0:T(1,128)}', space=vmem, size = 0x12000, scoped, tag = 'internal scratch']
  %s0 = inlined_call_operand.vmem [shape: bf16[2,9,9,16], index: 0, kind: input, shape index: {}]
  %s1 = inlined_call_operand.vmem [shape: bf16[2,9,9,16], index: 1, kind: input, shape index: {}]
  %s2 = inlined_call_operand.vmem [shape: bf16[64,32], index: 2, kind: input, shape index: {}]
  %s3 = inlined_call_operand.hbm [shape: f32[2,8,8,32], index: 3, kind: output, shape index: {0}]
  %s4 = inlined_call_operand.hbm [shape: f32[2,2,2,32], index: 4, kind: output, shape index: {1}]
  %5 = xla_tuple %s3, %s4
  %s6 = sld [smem:[#allocation0]]
  $region53: #{tpu_custom_call.1} parent=0
    _
  %s8 = ssub.s32 1, %s6
  %s9 = scalar_select 0, %s8, %s6
  $region1: #{tpu_custom_call.1} parent=0
    #allocation2 [shape = 'u8[32768]{0}', space=vmem, size = 0x8000, scoped, tag = 'output window, operand 0']
    #allocation3 [shape = 's32[2]{0}', space=sflag, size = 0x8, scoped, tag = 'scoped memory for tpu_custom_call.1']
    #allocation4 [shape = 'u8[2048]{0}', space=vmem, size = 0x800, scoped, tag = 'output window, operand 1']
    #allocation5 [shape = 's32[2]{0}', space=sflag, size = 0x8, scoped, tag = 'scoped memory for tpu_custom_call.1']
    %10 = vsyncpa [#allocation3], 0
    %s11 = scalar_lea.sflag [#allocation3], 1
    %12 = vsyncpa %s11, 0
    %13 = vsyncpa [#allocation5], 0
    %s14 = scalar_lea.sflag [#allocation5], 1
    %15 = vsyncpa %s14, 0
    loop: start=0, step=1, limit=6
    $region2: #{tpu_custom_call.1} parent=1 // loop_pre_header
      _
    $region3: #{tpu_custom_call.1} parent=1 // loop_header
      %s17 = sphi 0, %s21
      %p18 = scmp.ge.s32.totalorder %s17, 6
      %s24 = sphi 0, %s36
      %s25 = sphi 0, %s32
      %s26 = sphi 0, %s24
      %s27 = sphi 0, %s25
      %s28 = sphi 0, %s26
      %s29 = sphi 0, %s27
      %s41 = sphi 0, %s43
      %s44 = sphi 0, %s41
      %s45 = sphi 0, %s44
      %s61 = sphi 0, %s45
      %s73 = sphi 0, %s75
      %s76 = sphi 0, %s73
      %s77 = sphi 0, %s76
      %s93 = sphi 0, %s77
      %s97 = sphi 0, %s97
      %s99 = sphi 0, %s97
      %s100 = sphi 0, %s99
      %s114 = sphi 0, %s100
      %s122 = sphi 0, %s124
      %s125 = sphi 0, %s122
      %s126 = sphi 0, %s125
      %s142 = sphi 0, %s126
      %s150 = sphi 0, %s152
      %s153 = sphi 0, %s150
      %s154 = sphi 0, %s153
      %s170 = sphi 0, %s154
    $region4: #{tpu_custom_call.1} parent=1 // loop_header_branch
      %20 = sbr.rel (%p18) target = $region8
    $region5: #{tpu_custom_call.1} parent=1 // loop_body
      %s22 = ssub.s32 %s17, 1
      %s23 = ssub.s32 %s17, 2
      %s30 = sadd.s32 1, %s25
      %p31 = scmp.ge.s32.totalorder %s30, 2
      %s32 = scalar_select %p31, 0, %s30
      %s33 = sadd.s32 1, %s24
      %s34 = scalar_select %p31, %s33, %s24
      %p35 = scmp.ge.s32.totalorder %s34, 2
      %s36 = scalar_select %p35, 0, %s34
      %s37 = ssub.s32 %s24, %s36
      %s38 = ssub.s32 %s25, %s32
      %s39 = sor.u32 %s37, %s38
      %p40 = scmp.eq.s32.totalorder %s39, 0
      %s42 = sadd.s32 %s41, 1
      %s43 = scalar_select %p40, %s41, %s42
      %p46 = pneg %p40
      %p47 = scmp.eq.s32.totalorder %s17, 3
      %p48 = por %p46, %p47
      %p49 = scmp.ne.s32.totalorder %s41, %s44
      %p50 = scmp.eq.s32.totalorder %s17, 0
      %p51 = por %p49, %p50
      %p52 = scmp.ne.s32.totalorder %s41, %s44
      %p53 = scmp.eq.s32.totalorder %s22, 3
      %p54 = por %p52, %p53
      %p55 = scmp.ne.s32.totalorder %s44, %s45
      %p56 = scmp.eq.s32.totalorder %s22, 0
      %p57 = por %p55, %p56
      %p58 = scmp.ne.s32.totalorder %s44, %s45
      %p59 = scmp.eq.s32.totalorder %s23, 3
      %p60 = por %p58, %p59
      %p62 = scmp.ne.s32.totalorder %s45, %s61
      %p63 = scmp.eq.s32.totalorder %s23, 0
      %p64 = por %p62, %p63
      %s65 = smul.u32 %s25, 4
      %s66 = sadd.s32 %s65, 4
      %s67 = smul.u32 %s32, 4
      %s68 = sadd.s32 %s67, 4
      %s69 = ssub.s32 %s24, %s36
      %s70 = ssub.s32 %s66, %s68
      %s71 = sor.u32 %s69, %s70
      %p72 = scmp.eq.s32.totalorder %s71, 0
      %s74 = sadd.s32 %s73, 1
      %s75 = scalar_select %p72, %s73, %s74
      %p78 = pneg %p72
      %p79 = scmp.eq.s32.totalorder %s17, 3
      %p80 = por %p78, %p79
      %p81 = scmp.ne.s32.totalorder %s73, %s76
      %p82 = scmp.eq.s32.totalorder %s17, 0
      %p83 = por %p81, %p82
      %p84 = scmp.ne.s32.totalorder %s73, %s76
      %p85 = scmp.eq.s32.totalorder %s22, 3
      %p86 = por %p84, %p85
      %p87 = scmp.ne.s32.totalorder %s76, %s77
      %p88 = scmp.eq.s32.totalorder %s22, 0
      %p89 = por %p87, %p88
      %p90 = scmp.ne.s32.totalorder %s76, %s77
      %p91 = scmp.eq.s32.totalorder %s23, 3
      %p92 = por %p90, %p91
      %p94 = scmp.ne.s32.totalorder %s77, %s93
      %p95 = scmp.eq.s32.totalorder %s23, 0
      %p96 = por %p94, %p95
      %s98 = sadd.s32 %s97, 1
      %p101 = scmp.eq.s32.totalorder %s17, 3
      %p102 = scmp.ne.s32.totalorder %s97, %s99
      %p103 = scmp.eq.s32.totalorder %s17, 0
      %p104 = por %p102, %p103
      %p105 = scmp.ne.s32.totalorder %s97, %s99
      %p106 = scmp.eq.s32.totalorder %s22, 3
      %p107 = por %p105, %p106
      %p108 = scmp.ne.s32.totalorder %s99, %s100
      %p109 = scmp.eq.s32.totalorder %s22, 0
      %p110 = por %p108, %p109
      %p111 = scmp.ne.s32.totalorder %s99, %s100
      %p112 = scmp.eq.s32.totalorder %s23, 3
      %p113 = por %p111, %p112
      %p115 = scmp.ne.s32.totalorder %s100, %s114
      %p116 = scmp.eq.s32.totalorder %s23, 0
      %p117 = por %p115, %p116
      %s118 = ssub.s32 %s24, %s36
      %s119 = ssub.s32 %s25, %s32
      %s120 = sor.u32 %s118, %s119
      %p121 = scmp.eq.s32.totalorder %s120, 0
      %s123 = sadd.s32 %s122, 1
      %s124 = scalar_select %p121, %s122, %s123
      %p127 = pneg %p121
      %p128 = scmp.eq.s32.totalorder %s17, 3
      %p129 = por %p127, %p128
      %p130 = scmp.ne.s32.totalorder %s122, %s125
      %p131 = scmp.eq.s32.totalorder %s17, 0
      %p132 = por %p130, %p131
      %p133 = scmp.ne.s32.totalorder %s122, %s125
      %p134 = scmp.eq.s32.totalorder %s22, 3
      %p135 = por %p133, %p134
      %p136 = scmp.ne.s32.totalorder %s125, %s126
      %p137 = scmp.eq.s32.totalorder %s22, 0
      %p138 = por %p136, %p137
      %p139 = scmp.ne.s32.totalorder %s125, %s126
      %p140 = scmp.eq.s32.totalorder %s23, 3
      %p141 = por %p139, %p140
      %p143 = scmp.ne.s32.totalorder %s126, %s142
      %p144 = scmp.eq.s32.totalorder %s23, 0
      %p145 = por %p143, %p144
      %s146 = ssub.s32 %s24, %s36
      %s147 = ssub.s32 %s25, %s32
      %s148 = sor.u32 %s146, %s147
      %p149 = scmp.eq.s32.totalorder %s148, 0
      %s151 = sadd.s32 %s150, 1
      %s152 = scalar_select %p149, %s150, %s151
      %p155 = pneg %p149
      %p156 = scmp.eq.s32.totalorder %s17, 3
      %p157 = por %p155, %p156
      %p158 = scmp.ne.s32.totalorder %s150, %s153
      %p159 = scmp.eq.s32.totalorder %s17, 0
      %p160 = por %p158, %p159
      %p161 = scmp.ne.s32.totalorder %s150, %s153
      %p162 = scmp.eq.s32.totalorder %s22, 3
      %p163 = por %p161, %p162
      %p164 = scmp.ne.s32.totalorder %s153, %s154
      %p165 = scmp.eq.s32.totalorder %s22, 0
      %p166 = por %p164, %p165
      %p167 = scmp.ne.s32.totalorder %s153, %s154
      %p168 = scmp.eq.s32.totalorder %s23, 3
      %p169 = por %p167, %p168
      %p171 = scmp.ne.s32.totalorder %s154, %s170
      %p172 = scmp.eq.s32.totalorder %s23, 0
      %p173 = por %p171, %p172
      %p174 = scmp.le.s32.totalorder 1, %s17
      %p175 = scmp.lt.s32.totalorder %s17, 5
      %p176 = pnand %p174, %p175
      %p177 = pneg %p176
      // Predicated region
      $region9: #{tpu_custom_call.1} parent=5 // pred_check
        _
      $region10: #{tpu_custom_call.1} parent=5 // pred_check_branch
        %179 = sbr.rel (%p176) target = $region12
      $region11: #{tpu_custom_call.1} parent=5 // pred_region
        %s180 = ssub.s32 %s17, 1
        // Predicated region
        $region13: #{tpu_custom_call.1} parent=11 // pred_check
          %p181 = pneg %p110
        $region14: #{tpu_custom_call.1} parent=11 // pred_check_branch
          %183 = sbr.rel (%p181) target = $region16
        $region15: #{tpu_custom_call.1} parent=11 // pred_region
          _
        $region16: #{tpu_custom_call.1} parent=11 // pred_fallthru
          _
      $region12: #{tpu_custom_call.1} parent=5 // pred_fallthru
        _
      %p184 = scmp.lt.s32.totalorder %s17, 4
      // Predicated region
      $region17: #{tpu_custom_call.1} parent=5 // pred_check
        %p185 = pneg %p184
      $region18: #{tpu_custom_call.1} parent=5 // pred_check_branch
        %187 = sbr.rel (%p185) target = $region20
      $region19: #{tpu_custom_call.1} parent=5 // pred_region
        // Predicated region
        $region21: #{tpu_custom_call.1} parent=19 // pred_check
          %p188 = pneg %p51
        $region22: #{tpu_custom_call.1} parent=19 // pred_check_branch
          %190 = sbr.rel (%p188) target = $region24
        $region23: #{tpu_custom_call.1} parent=19 // pred_region
          %s191 = smul.u32 4, %s25
          %s192 = ssub.s32 9, %s191
          %p193 = scmp.lt.s32.totalorder %s192, 4
          %s194 = scalar_select %p193, %s192, 4
          %s195 = smul.u32 64, %s194
          %s196 = smul.u32 %s195, 2
          %p197 = scmp.lt.s32.totalorder %s24, 1
          %s198 = scalar_select %p197, %s24, 1
          %p199 = scmp.lt.s32.totalorder %s191, 8
          %s200 = scalar_select %p199, %s191, 8
          %s201 = smul.addr %s200, 2
          %s202 = smul.addr %s198, 18
          %s203 = sadd.s32 %s201, %s202
          %s204 = smul.addr %s203, 4
          %s205 = scalar_lea.vmem %s0, %s204
          %s206 = smul.u32 4, %s25
          %s207 = ssub.s32 9, %s206
          %p208 = scmp.lt.s32.totalorder %s207, 4
          %s209 = scalar_select %p208, %s207, 4
          %s210 = smul.u32 64, %s209
          %s211 = smul.u32 %s210, 2
        $region24: #{tpu_custom_call.1} parent=19 // pred_fallthru
          _
        // Predicated region
        $region25: #{tpu_custom_call.1} parent=19 // pred_check
          %p212 = pneg %p83
        $region26: #{tpu_custom_call.1} parent=19 // pred_check_branch
          %214 = sbr.rel (%p212) target = $region28
        $region27: #{tpu_custom_call.1} parent=19 // pred_region
          %s215 = smul.u32 %s25, 4
          %s216 = sadd.s32 %s215, 4
          %p217 = scmp.lt.s32.totalorder %s24, 1
          %s218 = scalar_select %p217, %s24, 1
          %p219 = scmp.lt.s32.totalorder %s216, 8
          %s220 = scalar_select %p219, %s216, 8
          %s221 = smul.addr %s220, 2
          %s222 = smul.addr %s218, 18
          %s223 = sadd.s32 %s221, %s222
          %s224 = smul.addr %s223, 4
          %s225 = scalar_lea.vmem %s1, %s224
          %s226 = smul.u32 %s25, 4
          %s227 = sadd.s32 %s226, 4
        $region28: #{tpu_custom_call.1} parent=19 // pred_fallthru
          _
      $region20: #{tpu_custom_call.1} parent=5 // pred_fallthru
        _
      %p228 = scmp.le.s32.totalorder 1, %s17
      %p229 = scmp.lt.s32.totalorder %s17, 5
      %p230 = pnand %p228, %p229
      %p231 = pneg %p230
      // Predicated region
      $region29: #{tpu_custom_call.1} parent=5 // pred_check
        _
      $region30: #{tpu_custom_call.1} parent=5 // pred_check_branch
        %233 = sbr.rel (%p230) target = $region32
      $region31: #{tpu_custom_call.1} parent=5 // pred_region
        %s234 = ssub.s32 %s17, 1
        %s235 = smul.u32 4, %s27
        %s236 = ssub.s32 9, %s235
        %p237 = scmp.lt.s32.totalorder %s236, 4
        %s238 = scalar_select %p237, %s236, 4
        %s239 = smul.u32 64, %s238
        %s240 = smul.u32 %s239, 2
        %p241 = scmp.lt.s32.totalorder %s26, 1
        %s242 = scalar_select %p241, %s26, 1
        %p243 = scmp.lt.s32.totalorder %s235, 8
        %s244 = scalar_select %p243, %s235, 8
        %s245 = smul.addr %s244, 2
        %s246 = smul.addr %s242, 18
        %s247 = sadd.s32 %s245, %s246
        %s248 = smul.addr %s247, 4
        %s249 = scalar_lea.vmem %s0, %s248
        %p250 = pneg %p57
        %p251 = pneg %p54
        %s252 = smul.u32 %s27, 4
        %s253 = sadd.s32 %s252, 4
        %p254 = scmp.lt.s32.totalorder %s26, 1
        %s255 = scalar_select %p254, %s26, 1
        %p256 = scmp.lt.s32.totalorder %s253, 8
        %s257 = scalar_select %p256, %s253, 8
        %s258 = smul.addr %s257, 2
        %s259 = smul.addr %s255, 18
        %s260 = sadd.s32 %s258, %s259
        %s261 = smul.addr %s260, 4
        %s262 = scalar_lea.vmem %s1, %s261
        %p263 = pneg %p89
        %p264 = pneg %p86
        %p265 = pneg %p110
        %p266 = pneg %p107
        %p267 = pneg %p138
        %p268 = pneg %p135
        %s269 = sand.u32 %s125, 1
        %s270 = scalar_lea.sflag [#allocation3], %s269
        %s271 = sand.u32 %s125, 1
        %s272 = smul.addr %s271, 32
        %s273 = scalar_lea.vmem [#allocation2], %s272
        %p274 = pneg %p166
        %p275 = pneg %p163
        %s276 = sand.u32 %s153, 1
        %s277 = scalar_lea.sflag [#allocation5], %s276
        %s278 = sand.u32 %s153, 1
        %s279 = smul.addr %s278, 2
        %s280 = scalar_lea.vmem [#allocation4], %s279
        %s281 = smul.u32 4, %s27
        %s282 = ssub.s32 9, %s281
        %p283 = scmp.lt.s32.totalorder %s282, 4
        %s284 = scalar_select %p283, %s282, 4
        %s285 = smul.u32 64, %s284
        %s286 = smul.u32 %s285, 2
        %p287 = scmp.lt.s32.totalorder %s26, 1
        %s288 = scalar_select %p287, %s26, 1
        %p289 = scmp.lt.s32.totalorder %s281, 8
        %s290 = scalar_select %p289, %s281, 8
        %s291 = smul.addr %s290, 2
        %s292 = smul.addr %s288, 18
        %s293 = sadd.s32 %s291, %s292
        %s294 = smul.addr %s293, 4
        %s295 = scalar_lea.vmem %s0, %s294
        %s296 = smul.u32 4, %s27
        %s297 = ssub.s32 9, %s296
        %p298 = scmp.lt.s32.totalorder %s297, 4
        %s299 = scalar_select %p298, %s297, 4
        %s300 = smul.u32 64, %s299
        %s301 = smul.u32 %s300, 2
        %s302 = smul.u32 %s27, 4
        %s303 = sadd.s32 %s302, 4
        %p304 = scmp.lt.s32.totalorder %s26, 1
        %s305 = scalar_select %p304, %s26, 1
        %p306 = scmp.lt.s32.totalorder %s303, 8
        %s307 = scalar_select %p306, %s303, 8
        %s308 = smul.addr %s307, 2
        %s309 = smul.addr %s305, 18
        %s310 = sadd.s32 %s308, %s309
        %s311 = smul.addr %s310, 4
        %s312 = scalar_lea.vmem %s1, %s311
        %s313 = smul.u32 %s27, 4
        %s314 = sadd.s32 %s313, 4
        %s315 = smul.u32 4, %s27
        %v317 = vld [vmem:[%s295] sm:$0xf]
        %v318 = vld [vmem:[%s295 + $0x4] sm:$0x1]
        %v319 = vld [vmem:[%s295 + $0x8] sm:$0xf]
        %v320 = vld [vmem:[%s295 + $0xc] sm:$0x1]
        %v321 = vld [vmem:[%s295 + $0x10] sm:$0xf]
        %v322 = vld [vmem:[%s295 + $0x14] sm:$0x1]
        %v323 = vld [vmem:[%s295 + $0x18] sm:$0xf]
        %v324 = vld [vmem:[%s295 + $0x1c] sm:$0x1]
        %v325 = vunpack.c.l.bf16 %v317
        %v326 = vunpack.c.l.bf16 %v318
        %v327 = vunpack.c.l.bf16 %v319
        %v328 = vunpack.c.l.bf16 %v320
        %v329 = vunpack.c.l.bf16 %v321
        %v330 = vunpack.c.l.bf16 %v322
        %v331 = vunpack.c.l.bf16 %v323
        %v332 = vunpack.c.l.bf16 %v324
        %v333 = vld [vmem:[%s312] sm:$0xf]
        %v334 = vld [vmem:[%s312 + $0x4] sm:$0x1]
        %v335 = vunpack.c.l.bf16 %v333
        %v336 = vunpack.c.l.bf16 %v334
        %vm345 = vcmask 1046528
        %v346 = vrot.slane %v325, 1
        %v347 = vrot.slane %v326, 1
        %v348 = vsel %vm345, %v346, %v347
        %v349 = vrot.slane %v327, 1
        %v350 = vrot.slane %v328, 1
        %v351 = vsel %vm345, %v349, %v350
        %v352 = vrot.slane %v329, 1
        %v353 = vrot.slane %v330, 1
        %v354 = vsel %vm345, %v352, %v353
        %v355 = vrot.slane %v331, 1
        %v356 = vrot.slane %v332, 1
        %v357 = vsel %vm345, %v355, %v356
        %358 = vrot.lane.b32.xlu0 %v348, 16
        %v359 = vpop.permute.xlu0 %358
        %360 = vrot.lane.b32.xlu0 %v351, 16
        %v361 = vpop.permute.xlu0 %360
        %362 = vrot.lane.b32.xlu0 %v354, 16
        %v363 = vpop.permute.xlu0 %362
        %364 = vrot.lane.b32.xlu0 %v357, 16
        %v365 = vpop.permute.xlu0 %364
        %371 = vrot.lane.b32.xlu0 %v327, 32
        %v372 = vpop.permute.xlu0 %371
        %373 = vrot.lane.b32.xlu0 %v329, 32
        %v374 = vpop.permute.xlu0 %373
        %375 = vrot.lane.b32.xlu0 %v331, 32
        %v376 = vpop.permute.xlu0 %375
        %377 = vrot.lane.b32.xlu0 %v335, 32
        %v378 = vpop.permute.xlu0 %377
        %v384 = vrot.slane %v335, 1
        %v385 = vrot.slane %v336, 1
        %v386 = vsel %vm345, %v384, %v385
        %387 = vrot.lane.b32.xlu0 %v351, 48
        %v388 = vpop.permute.xlu0 %387
        %389 = vrot.lane.b32.xlu0 %v354, 48
        %v390 = vpop.permute.xlu0 %389
        %391 = vrot.lane.b32.xlu0 %v357, 48
        %v392 = vpop.permute.xlu0 %391
        %393 = vrot.lane.b32.xlu0 %v386, 48
        %v394 = vpop.permute.xlu0 %393
        %vm399 = vcmask 130048
        %v400 = vsel %vm399, %v325, %v359
        %v401 = vsel %vm399, %v327, %v361
        %v402 = vsel %vm399, %v329, %v363
        %v403 = vsel %vm399, %v331, %v365
        %vm404 = vcmask 261120
        %v405 = vsel %vm404, %v400, %v372
        %v406 = vsel %vm404, %v401, %v374
        %v407 = vsel %vm404, %v402, %v376
        %v408 = vsel %vm404, %v403, %v378
        %vm409 = vcmask 392192
        %v410 = vsel %vm409, %v405, %v388
        %v411 = vsel %vm409, %v406, %v390
        %v412 = vsel %vm409, %v407, %v392
        %v413 = vsel %vm409, %v408, %v394
        %v414 = vpack.c.bf16 %v411, %v410
        %v415 = vpack.c.bf16 %v413, %v412
        %v416 = vld [vmem:[%s2] sm:$0xf]
        %v417 = vld [vmem:[%s2 + $0x4] sm:$0xf]
        %v418 = vld [vmem:[%s2 + $0x8] sm:$0xf]
        %v419 = vld [vmem:[%s2 + $0xc] sm:$0xf]
        %v420 = vld [vmem:[%s2 + $0x10] sm:$0xf]
        %v421 = vld [vmem:[%s2 + $0x14] sm:$0xf]
        %v422 = vld [vmem:[%s2 + $0x18] sm:$0xf]
        %v423 = vld [vmem:[%s2 + $0x1c] sm:$0xf]
        %v432 = vunpack.c.l.b16 %v416
        %v433 = vunpack.c.l.b16 %v417
        %v434 = vunpack.c.l.b16 %v418
        %v435 = vunpack.c.l.b16 %v419
        %v436 = vunpack.c.l.b16 %v420
        %v437 = vunpack.c.l.b16 %v421
        %v438 = vunpack.c.l.b16 %v422
        %v439 = vunpack.c.l.b16 %v423
        %v440 = vpack.c.b16 %v433, %v432
        %v441 = vpack.c.b16 %v435, %v434
        %v442 = vpack.c.b16 %v437, %v436
        %v443 = vpack.c.b16 %v439, %v438
        %vm448 = vcmask 523264
        %v450 = vsel %vm448, %v414, 0
        %v453 = vsel %vm448, %v415, 0
        %455 = vmatprep.subr.bf16.mxu0 0
        %456 = vmatpush1.bf16.msra.mxu0 0
        %457 = vmatprep.subr.bf16.mxu0 0
        %458 = vmatpush1.bf16.msra.mxu0 0
        %459 = vmatprep.subr.bf16.mxu0 0
        %460 = vmatpush1.bf16.msra.mxu0 0
        %461 = vmatprep.subr.bf16.mxu0 0
        %462 = vmatpush1.bf16.msra.mxu0 0
        %463 = vmatprep.subr.bf16.mxu0 0
        %464 = vmatpush1.bf16.msra.mxu0 %v443
        %465 = vmatprep.subr.bf16.mxu0 0
        %466 = vmatpush1.bf16.msra.mxu0 %v442
        %467 = vmatprep.subr.bf16.mxu0 0
        %468 = vmatpush1.bf16.msra.mxu0 %v441
        %469 = vmatprep.subr.bf16.mxu0 0
        %470 = vmatpush1.bf16.msra.mxu0 %v440
        %471 = vmatprep.subr.bf16.mxu0 0
        %472 = vmatpush2.bf16.msra.mxu0 0
        %473 = vmatprep.subr.bf16.mxu0 0
        %474 = vmatpush2.bf16.msra.mxu0 0
        %475 = vmatprep.subr.bf16.mxu0 0
        %476 = vmatpush2.bf16.msra.mxu0 0
        %477 = vmatprep.subr.bf16.mxu0 0
        %478 = vmatpush2.bf16.msra.mxu0 0
        %479 = vmatprep.subr.bf16.mxu0 0
        %480 = vmatpush2.bf16.msra.mxu0 0
        %481 = vmatprep.subr.bf16.mxu0 0
        %482 = vmatpush2.bf16.msra.mxu0 0
        %483 = vmatprep.subr.bf16.mxu0 0
        %484 = vmatpush2.bf16.msra.mxu0 0
        %485 = vmatprep.subr.bf16.mxu0 0
        %486 = vmatpush2.bf16.msra.mxu0 0
        %487 = vmatprep.mubr.bf16.mxu0 0
        %488 = vmatmul.mubr.bf16.gmra.mxu0 %v450
        %v489 = vpop.f32.mrf.mxu0
        %v490 = vadd.f32 0.0, %v489
        %v491 = vpop.f32.mrf.mxu0
        %v492 = vpop.f32.mrf.mxu0
        %v493 = vadd.f32 0.0, %v492
        %v494 = vpop.f32.mrf.mxu0
        %495 = vmatprep.mubr.bf16.mxu0 0
        %496 = vmatmul.mubr.bf16.gmra.mxu0 %v453
        %v497 = vpop.f32.mrf.mxu0
        %v498 = vadd.f32 0.0, %v497
        %v499 = vpop.f32.mrf.mxu0
        %v500 = vpop.f32.mrf.mxu0
        %v501 = vadd.f32 0.0, %v500
        %v502 = vpop.f32.mrf.mxu0
        %503 = vdwg.mxu0
        %504 = vst.msk [vmem:[%s273] sm:$0xff] %vm404, %v490
        %505 = vst.msk [vmem:[%s273 + $0x8] sm:$0xff] %vm404, %v493
        %506 = vst.msk [vmem:[%s273 + $0x10] sm:$0xff] %vm404, %v498
        %507 = vst.msk [vmem:[%s273 + $0x18] sm:$0xff] %vm404, %v501
        %v508 = vsel %vm404, %v490, 0.0
        %v509 = vsel %vm404, %v493, 0.0
        %v510 = vadd.f32 %v508, %v509
        %v511 = vsel %vm404, %v498, 0.0
        %v512 = vadd.f32 %v510, %v511
        %v513 = vsel %vm404, %v501, 0.0
        %v514 = vadd.f32 %v512, %v513
        %v515 = vrot.slane %v514, 4
        %v516 = vadd.f32 %v514, %v515
        %v517 = vrot.slane %v516, 2
        %v518 = vadd.f32 %v516, %v517
        %v519 = vrot.slane %v518, 1
        %v520 = vadd.f32 %v518, %v519
        %v521 = vmul.f32 %v490, %v490
        %v522 = vmul.f32 %v493, %v493
        %v523 = vmul.f32 %v498, %v498
        %v524 = vmul.f32 %v501, %v501
        %v525 = vsel %vm404, %v521, 0.0
        %v526 = vsel %vm404, %v522, 0.0
        %v527 = vadd.f32 %v525, %v526
        %v528 = vsel %vm404, %v523, 0.0
        %v529 = vadd.f32 %v527, %v528
        %v530 = vsel %vm404, %v524, 0.0
        %v531 = vadd.f32 %v529, %v530
        %v532 = vrot.slane %v531, 4
        %v533 = vadd.f32 %v531, %v532
        %v534 = vrot.slane %v533, 2
        %v535 = vadd.f32 %v533, %v534
        %v536 = vrot.slane %v535, 1
        %v537 = vadd.f32 %v535, %v536
        %vm538 = vcmask 1040384
        %v539 = vsel %vm538, %v520, %v537
        %vm540 = vcmask 254976
        %541 = vst.msk [vmem:[%s280] sm:$0x3] %vm540, %v539
        %s542 = sand.u32 %s125, 1
        %s543 = scalar_lea.sflag [#allocation3], %s542
        %s544 = sand.u32 %s125, 1
        %s545 = smul.addr %s544, 32
        %s546 = scalar_lea.vmem [#allocation2], %s545
        %s547 = sand.u32 %s153, 1
        %s548 = scalar_lea.sflag [#allocation5], %s547
        %s549 = sand.u32 %s153, 1
        %s550 = smul.addr %s549, 2
        %s551 = scalar_lea.vmem [#allocation4], %s550
        // Predicated region
        $region33: #{tpu_custom_call.1} parent=31 // pred_check
          %p552 = pneg %p135
        $region34: #{tpu_custom_call.1} parent=31 // pred_check_branch
          %554 = sbr.rel (%p552) target = $region36
        $region35: #{tpu_custom_call.1} parent=31 // pred_region
          %s555 = smul.u32 4, %s27
          %s557 = ssub.s32 512, 512
          %558 = vsyncadd %s543, %s557
          %s559 = smul.addr %s26, 8
          %s560 = sadd.s32 %s555, %s559
          %s561 = smul.addr %s560, 128
          %s562 = scalar_lea.hbm %s3, %s561
          %s563 = sshll.u32 %s546, 4
          %s564 = int_to_ptr.vmem [resolvable:$true] %s563
          %569 = dma.vmem_to_hbm [thread:$0]  %s564, 512, %s562, %s543, 128, 128, 8
        $region36: #{tpu_custom_call.1} parent=31 // pred_fallthru
          _
        // Predicated region
        $region37: #{tpu_custom_call.1} parent=31 // pred_check
          %p570 = pneg %p163
        $region38: #{tpu_custom_call.1} parent=31 // pred_check_branch
          %572 = sbr.rel (%p570) target = $region40
        $region39: #{tpu_custom_call.1} parent=31 // pred_region
          %s574 = ssub.s32 32, 32
          %575 = vsyncadd %s548, %s574
          %s576 = smul.addr %s26, 2
          %s577 = sadd.s32 %s27, %s576
          %s578 = smul.addr %s577, 32
          %s579 = scalar_lea.hbm %s4, %s578
          %s581 = sshll.u32 %s551, 4
          %s582 = int_to_ptr.vmem [resolvable:$true] %s581
          %584 = dma.vmem_to_hbm [thread:$0]  %s582, 32, %s579, %s548
        $region40: #{tpu_custom_call.1} parent=31 // pred_fallthru
          _
      $region32: #{tpu_custom_call.1} parent=5 // pred_fallthru
        _
      %p585 = scmp.le.s32.totalorder 2, %s17
      // Predicated region
      $region41: #{tpu_custom_call.1} parent=5 // pred_check
        %p586 = pneg %p585
      $region42: #{tpu_custom_call.1} parent=5 // pred_check_branch
        %588 = sbr.rel (%p586) target = $region44
      $region43: #{tpu_custom_call.1} parent=5 // pred_region
        %s589 = ssub.s32 %s17, 2
        // Predicated region
        $region45: #{tpu_custom_call.1} parent=43 // pred_check
          %p590 = pneg %p141
        $region46: #{tpu_custom_call.1} parent=43 // pred_check_branch
          %592 = sbr.rel (%p590) target = $region48
        $region47: #{tpu_custom_call.1} parent=43 // pred_region
          %s593 = sand.u32 %s126, 1
          %s594 = scalar_lea.sflag [#allocation3], %s593
          %s595 = sand.u32 %s126, 1
          %s596 = smul.addr %s595, 32
          %s597 = scalar_lea.vmem [#allocation2], %s596
          %598 = dma.done %s594, 512
        $region48: #{tpu_custom_call.1} parent=43 // pred_fallthru
          _
        // Predicated region
        $region49: #{tpu_custom_call.1} parent=43 // pred_check
          %p599 = pneg %p169
        $region50: #{tpu_custom_call.1} parent=43 // pred_check_branch
          %601 = sbr.rel (%p599) target = $region52
        $region51: #{tpu_custom_call.1} parent=43 // pred_region
          %s602 = sand.u32 %s154, 1
          %s603 = scalar_lea.sflag [#allocation5], %s602
          %s604 = sand.u32 %s154, 1
          %s605 = smul.addr %s604, 2
          %s606 = scalar_lea.vmem [#allocation4], %s605
          %607 = dma.done %s603, 32
        $region52: #{tpu_custom_call.1} parent=43 // pred_fallthru
          _
      $region44: #{tpu_custom_call.1} parent=5 // pred_fallthru
        _
    $region6: #{tpu_custom_call.1} parent=1 // loop_footer
      %s21 = sadd.s32 1, %s17
    $region7: #{tpu_custom_call.1} parent=1 // loop_footer_branch
      %16 = sbr.rel target = $region3
    $region8: #{tpu_custom_call.1} parent=1 // loop_exit
      _
    %608 = vsyncpa [#allocation3], 1
    %s609 = scalar_lea.sflag [#allocation3], 1
    %610 = vsyncpa %s609, 1
    %611 = vsyncpa [#allocation5], 1
    %s612 = scalar_lea.sflag [#allocation5], 1
    %613 = vsyncpa %s612, 1

</llo_original>
